<compile_context>
chip_gen: v6e
topology: v6e:2x2x1
jax: 0.10.0
libtpu: 0.0.40
codegen_flags: <defaults>
</compile_context>

<pallas_src>
import functools

import jax
import jax.numpy as jnp
from jax.experimental import pallas as pl
from jax.experimental.pallas import tpu as pltpu

LANE = 128       # lane width for hidden dims / packed-param columns
BIAS_ROWS = 8    # one 8-sublane block holds all three bias rows (b1,b2,b3)


def _round_up(x, m):
    return ((x + m - 1) // m) * m


def _choose_tiles(batch, block_batch, min_split_batch=128):
    """Pick (batch tile, padded batch) so batch_p doesn't overshoot and the
    grid has >=2 steps for non-tiny batches (lets v7x's 2 TCs split it)."""
    batch8 = _round_up(batch, 8)
    steps = max(1, (batch8 + block_batch - 1) // block_batch)
    if batch >= min_split_batch:
        steps = max(steps, 2)
    tb = _round_up((batch8 + steps - 1) // steps, 8)
    batch_p = _round_up(batch8, tb)
    return tb, batch_p


def qnet_kernel(x_ref, p_ref, o_ref, *, state_dim, r1, out_dim):
    # x_ref: (tb, state_dim) f32   (unpadded feature dim)
    # p_ref: (r1 + 2*LANE + 8, 128) f32   (w1 | w2 | w3 | biases), resident
    # o_ref: (tb, out_dim) f32     (narrow, full-dim last axis)
    x = x_ref[...]
    w1 = p_ref[0:state_dim, :]                       # (state_dim, 128)
    w2 = p_ref[r1:r1 + LANE, :]                      # (128, 128)
    w3 = p_ref[r1 + LANE:r1 + 2 * LANE, :]           # (128, 128)
    bias = p_ref[r1 + 2 * LANE:r1 + 2 * LANE + BIAS_ROWS, :]
    b1 = bias[0:1, :]
    b2 = bias[1:2, :]
    b3 = bias[2:3, :]

    # Layer 1: Linear + ReLU (f32 throughout; MXU has huge slack here).
    h1 = jnp.dot(x, w1, preferred_element_type=jnp.float32) + b1
    h1 = jnp.maximum(h1, 0.0)
    # Layer 2: Linear + ReLU.
    h2 = jnp.dot(h1, w2, preferred_element_type=jnp.float32) + b2
    h2 = jnp.maximum(h2, 0.0)
    # Layer 3: Q-values, no activation. Store only the real action lanes.
    q = jnp.dot(h2, w3, preferred_element_type=jnp.float32) + b3
    o_ref[...] = q[:, :out_dim]


def pack_params(params_f32):
    """Pack w1 (state_dim rows), w2/w3 (128 rows each) lane-padded to 128
    columns, plus one 8-row bias block (b1,b2,b3 on rows 0..2), into a single
    contiguous f32 buffer -> one resident DMA."""
    w1, b1, w2, b2, w3, b3 = params_f32
    state_dim = w1.shape[0]
    r1 = _round_up(state_dim, 8)

    def pad_w(w, rows):
        fi, fo = w.shape
        assert fi <= rows and fo <= LANE
        return jnp.zeros((rows, LANE), jnp.float32).at[:fi, :fo].set(w)

    bias_blk = jnp.zeros((BIAS_ROWS, LANE), jnp.float32)
    bias_blk = bias_blk.at[0, :b1.shape[-1]].set(b1.reshape(-1))
    bias_blk = bias_blk.at[1, :b2.shape[-1]].set(b2.reshape(-1))
    bias_blk = bias_blk.at[2, :b3.shape[-1]].set(b3.reshape(-1))

    packed = jnp.concatenate(
        [pad_w(w1, r1), pad_w(w2, LANE), pad_w(w3, LANE), bias_blk], axis=0)
    assert packed.shape == (r1 + 2 * LANE + BIAS_ROWS, LANE)
    return packed


def qnetwork_forward(x, packed_params, state_dim, action_dim, block_batch=1024):
    """Fused QNetwork forward. x: [batch, state_dim] f32 -> [batch, action_dim] f32."""
    batch, sd = x.shape
    assert sd == state_dim and action_dim <= LANE
    r1 = _round_up(state_dim, 8)
    param_rows = r1 + 2 * LANE + BIAS_ROWS
    assert packed_params.shape == (param_rows, LANE)

    tb, batch_p = _choose_tiles(batch, block_batch)
    grid = (batch_p // tb,)

    # Only pad rows (if the batch isn't a tile multiple); features stay unpadded.
    if batch_p != batch:
        x_in = jnp.zeros((batch_p, state_dim), x.dtype).at[:batch].set(x)
    else:
        x_in = x

    flops = 2 * batch_p * (state_dim * LANE + LANE * LANE + LANE * LANE)
    bytes_accessed = (x_in.size * x_in.dtype.itemsize
                      + packed_params.size * packed_params.dtype.itemsize
                      + batch_p * action_dim * 4)

    kernel = functools.partial(
        qnet_kernel, state_dim=state_dim, r1=r1, out_dim=action_dim)

    out = pl.pallas_call(
        kernel,
        out_shape=jax.ShapeDtypeStruct((batch_p, action_dim), jnp.float32),
        grid=grid,
        in_specs=[
            # x streams over the batch grid (auto double-buffered), unpadded lanes.
            pl.BlockSpec((tb, state_dim), lambda i: (i, 0)),
            # Packed params: constant block index -> resident in VMEM, one DMA.
            pl.BlockSpec((param_rows, LANE), lambda i: (0, 0)),
        ],
        # Narrow full-dim output: tiny HBM writeback per row.
        out_specs=pl.BlockSpec((tb, action_dim), lambda i: (i, 0)),
        compiler_params=pltpu.CompilerParams(
            dimension_semantics=("parallel",)),
        cost_estimate=pl.CostEstimate(
            flops=flops, transcendentals=0, bytes_accessed=bytes_accessed),
    )(x_in, packed_params)

    if batch_p != batch:
        out = out[:batch]
    return out


def init_params(key, state_dim, layer_1_nodes, layer_2_nodes, action_dim):
    """PyTorch nn.Linear-style init, stored transposed as [in, out] / [1, out]."""
    k1, k2, k3, k4, k5, k6 = jax.random.split(key, 6)

    def lin(kw, kb, fan_in, fan_out):
        bound = 1.0 / jnp.sqrt(fan_in)
        w = jax.random.uniform(kw, (fan_in, fan_out), jnp.float32, -bound, bound)
        b = jax.random.uniform(kb, (1, fan_out), jnp.float32, -bound, bound)
        return w, b

    w1, b1 = lin(k1, k2, state_dim, layer_1_nodes)
    w2, b2 = lin(k3, k4, layer_1_nodes, layer_2_nodes)
    w3, b3 = lin(k5, k6, layer_2_nodes, action_dim)
    return (w1, b1, w2, b2, w3, b3)


def reference_forward(x, params_f32):
    """Pure-JAX f32 reference (matches the PyTorch module's math)."""
    w1, b1, w2, b2, w3, b3 = params_f32
    h1 = jnp.maximum(x @ w1 + b1, 0.0)
    h2 = jnp.maximum(h1 @ w2 + b2, 0.0)
    return h2 @ w3 + b3


if __name__ == "__main__":
    # Small shapes consistent with the module: batch of drone states -> Q-values.
    batch = 8
    state_dim = 8          # drone state vector size
    layer_1_nodes = 32     # cfg.agent.layer_1_nodes
    layer_2_nodes = 32     # cfg.agent.layer_2_nodes
    action_dim = 4         # number of discrete actions

    key = jax.random.PRNGKey(0)
    kx, kp = jax.random.split(key)
    x = jax.random.normal(kx, (batch, state_dim), dtype=jnp.float32)
    params = init_params(kp, state_dim, layer_1_nodes, layer_2_nodes, action_dim)
    packed = pack_params(params)

    q_vals = qnetwork_forward(x, packed, state_dim, action_dim)
    q_vals = jax.block_until_ready(q_vals)

    q_ref = reference_forward(x, params)
    assert q_vals.shape == (batch, action_dim)
    # Tolerance covers possible reduced-precision MXU passes for f32 matmuls.
    assert jnp.allclose(q_vals, q_ref, atol=2e-2, rtol=2e-2), float(
        jnp.max(jnp.abs(q_vals - q_ref)))

    print("KERNEL_OK")
</pallas_src>

<mosaic_0001>
module attributes {stable_mosaic.version = 11 : i64} {
  func.func @qnet_kernel(%arg0: i32, %arg1: memref<8x8xf32, #tpu.memory_space<vmem>>, %arg2: memref<272x128xf32, #tpu.memory_space<vmem>>, %arg3: memref<8x4xf32, #tpu.memory_space<vmem>>) attributes {dimension_semantics = [#tpu.dimension_semantics<parallel>], iteration_bounds = array<i64: 1>, scalar_prefetch = 0 : i64, scratch_operands = 0 : i64, tpu.core_type = #tpu.core_type<tc>, window_params = [{transform_indices = @transform_0, window_bounds = array<i64: 8, 8>}, {pipeline_mode = #tpu.pipeline_mode<synchronous>, transform_indices = @transform_1, window_bounds = array<i64: 272, 128>}, {transform_indices = @transform_2, window_bounds = array<i64: 8, 4>}]} {
    %c0 = arith.constant 0 : index
    %c0_0 = arith.constant 0 : index
    %0 = vector.load %arg1[%c0, %c0_0] : memref<8x8xf32, #tpu.memory_space<vmem>>, vector<8x8xf32>
    %c0_1 = arith.constant 0 : index
    %c0_2 = arith.constant 0 : index
    %1 = vector.load %arg2[%c0_1, %c0_2] : memref<272x128xf32, #tpu.memory_space<vmem>>, vector<8x128xf32>
    %c8 = arith.constant 8 : index
    %c0_3 = arith.constant 0 : index
    %2 = vector.load %arg2[%c8, %c0_3] : memref<272x128xf32, #tpu.memory_space<vmem>>, vector<128x128xf32>
    %c136 = arith.constant 136 : index
    %c0_4 = arith.constant 0 : index
    %3 = vector.load %arg2[%c136, %c0_4] : memref<272x128xf32, #tpu.memory_space<vmem>>, vector<128x128xf32>
    %c264 = arith.constant 264 : index
    %c0_5 = arith.constant 0 : index
    %4 = vector.load %arg2[%c264, %c0_5] : memref<272x128xf32, #tpu.memory_space<vmem>>, vector<8x128xf32>
    %5 = vector.extract_strided_slice %4 {offsets = [0, 0], sizes = [1, 128], strides = [1, 1]} : vector<8x128xf32> to vector<1x128xf32>
    %6 = vector.extract_strided_slice %4 {offsets = [1, 0], sizes = [1, 128], strides = [1, 1]} : vector<8x128xf32> to vector<1x128xf32>
    %7 = vector.extract_strided_slice %4 {offsets = [2, 0], sizes = [1, 128], strides = [1, 1]} : vector<8x128xf32> to vector<1x128xf32>
    %cst = arith.constant dense<0.000000e+00> : vector<8x128xf32>
    %8 = tpu.matmul %0, %1, %cst {dimension_numbers = #tpu.dot_dimension_numbers<[1], [0], [0], [1], [0, 0, 1, 1], [], []>} : vector<8x8xf32>, vector<8x128xf32>, vector<8x128xf32> -> vector<8x128xf32>
    %9 = vector.broadcast %5 : vector<1x128xf32> to vector<8x128xf32>
    %10 = arith.addf %8, %9 : vector<8x128xf32>
    %cst_6 = arith.constant 0.000000e+00 : f32
    %11 = vector.broadcast %cst_6 : f32 to vector<8x128xf32>
    %12 = arith.maximumf %10, %11 : vector<8x128xf32>
    %cst_7 = arith.constant dense<0.000000e+00> : vector<8x128xf32>
    %13 = tpu.matmul %12, %2, %cst_7 {dimension_numbers = #tpu.dot_dimension_numbers<[1], [0], [0], [1], [0, 0, 1, 1], [], []>} : vector<8x128xf32>, vector<128x128xf32>, vector<8x128xf32> -> vector<8x128xf32>
    %14 = vector.broadcast %6 : vector<1x128xf32> to vector<8x128xf32>
    %15 = arith.addf %13, %14 : vector<8x128xf32>
    %cst_8 = arith.constant 0.000000e+00 : f32
    %16 = vector.broadcast %cst_8 : f32 to vector<8x128xf32>
    %17 = arith.maximumf %15, %16 : vector<8x128xf32>
    %cst_9 = arith.constant dense<0.000000e+00> : vector<8x128xf32>
    %18 = tpu.matmul %17, %3, %cst_9 {dimension_numbers = #tpu.dot_dimension_numbers<[1], [0], [0], [1], [0, 0, 1, 1], [], []>} : vector<8x128xf32>, vector<128x128xf32>, vector<8x128xf32> -> vector<8x128xf32>
    %19 = vector.broadcast %7 : vector<1x128xf32> to vector<8x128xf32>
    %20 = arith.addf %18, %19 : vector<8x128xf32>
    %21 = vector.extract_strided_slice %20 {offsets = [0, 0], sizes = [8, 4], strides = [1, 1]} : vector<8x128xf32> to vector<8x4xf32>
    %c0_10 = arith.constant 0 : index
    %c0_11 = arith.constant 0 : index
    %22 = vector.load %arg3[%c0_10, %c0_11] : memref<8x4xf32, #tpu.memory_space<vmem>>, vector<8x4xf32>
    tpu.vector_store %arg3[%c0_10, %c0_11], %21 {strides = array<i32>} : memref<8x4xf32, #tpu.memory_space<vmem>>, vector<8x4xf32>,
    return
  }
  func.func @transform_0(%arg0: i32) -> (i32, i32) {
    %c0_i32 = arith.constant 0 : i32
    %c0_i32_0 = arith.constant 0 : i32
    return %arg0, %c0_i32 : i32, i32
  }
  func.func @transform_1(%arg0: i32) -> (i32, i32) {
    %c0_i32 = arith.constant 0 : i32
    %c0_i32_0 = arith.constant 0 : i32
    %c0_i32_1 = arith.constant 0 : i32
    return %c0_i32, %c0_i32_0 : i32, i32
  }
  func.func @transform_2(%arg0: i32) -> (i32, i32) {
    %c0_i32 = arith.constant 0 : i32
    %c0_i32_0 = arith.constant 0 : i32
    return %arg0, %c0_i32 : i32, i32
  }
}

</mosaic_0001>

<llo_original>
// kernel: tpu_custom_call.1
$region0: #{tpu_custom_call.1}
  #allocation0 [shape = 'u32[]', space=smem, size = 0x4, offset = 0x4, fixed_abs, tag = 'smem constant byte address 0x4 - core index']
  #allocation1 [shape = 'u32[144,128]{1,0:T(1,128)}', space=vmem, size = 0x12000, scoped, tag = 'internal scratch']
  %s0 = inlined_call_operand.hbm [shape: f32[8,8], index: 0, kind: input, shape index: {}]
  %s1 = inlined_call_operand.hbm [shape: f32[272,128], index: 1, kind: input, shape index: {}]
  %s2 = inlined_call_operand.vmem [shape: f32[8,4], index: 2, kind: output, shape index: {}]
  %s3 = sld [smem:[#allocation0]]
  $region26: #{tpu_custom_call.1} parent=0
    _
  %s5 = ssub.s32 1, %s3
  %s6 = scalar_select 0, %s5, %s3
  $region1: #{tpu_custom_call.1} parent=0
    #allocation2 [shape = 'u8[4096]{0}', space=vmem, size = 0x1000, scoped, tag = 'input window, operand 0, single buffered']
    #allocation3 [shape = 's32[1]{0}', space=sflag, size = 0x4, scoped, tag = 'scoped memory for tpu_custom_call.1']
    #allocation4 [shape = 'u8[139264]{0}', space=vmem, size = 0x22000, scoped, tag = 'input window, operand 1, single buffered']
    #allocation5 [shape = 's32[1]{0}', space=sflag, size = 0x4, scoped, tag = 'scoped memory for tpu_custom_call.1']
    %7 = vsyncpa [#allocation3], 0
    %8 = vsyncpa [#allocation5], 0
    // Predicated region
    $region2: #{tpu_custom_call.1} parent=1 // pred_check
      _
    $region3: #{tpu_custom_call.1} parent=1 // pred_check_branch
      %10 = sbr.rel (0) target = $region5
    $region4: #{tpu_custom_call.1} parent=1 // pred_region
      %s12 = ssub.s32 128, 128
      %13 = vsyncadd [#allocation3], %s12
      %s15 = sshll.u32 [#allocation2], 4
      %s16 = int_to_ptr.vmem [resolvable:$true] %s15
      %18 = dma.hbm_to_vmem [thread:$0]  %s0, 128, %s16, [#allocation3]
    $region5: #{tpu_custom_call.1} parent=1 // pred_fallthru
      _
    // Predicated region
    $region6: #{tpu_custom_call.1} parent=1 // pred_check
      _
    $region7: #{tpu_custom_call.1} parent=1 // pred_check_branch
      %20 = sbr.rel (0) target = $region9
    $region8: #{tpu_custom_call.1} parent=1 // pred_region
      %s22 = ssub.s32 4352, 4352
      %23 = vsyncadd [#allocation5], %s22
      %s24 = sshll.u32 [#allocation4], 4
      %s25 = int_to_ptr.vmem [resolvable:$true] %s24
      %30 = dma.hbm_to_vmem [thread:$0]  %s1, 4352, %s25, [#allocation5], 128, 128, 8
    $region9: #{tpu_custom_call.1} parent=1 // pred_fallthru
      _
    // Predicated region
    $region10: #{tpu_custom_call.1} parent=1 // pred_check
      _
    $region11: #{tpu_custom_call.1} parent=1 // pred_check_branch
      %32 = sbr.rel (0) target = $region13
    $region12: #{tpu_custom_call.1} parent=1 // pred_region
      %33 = dma.done [#allocation3], 128
    $region13: #{tpu_custom_call.1} parent=1 // pred_fallthru
      _
    // Predicated region
    $region14: #{tpu_custom_call.1} parent=1 // pred_check
      _
    $region15: #{tpu_custom_call.1} parent=1 // pred_check_branch
      %35 = sbr.rel (0) target = $region17
    $region16: #{tpu_custom_call.1} parent=1 // pred_region
      %36 = dma.done [#allocation5], 4352
    $region17: #{tpu_custom_call.1} parent=1 // pred_fallthru
      _
    %v37 = vld [vmem:[#allocation2] sm:$0xff]
    %v38 = vld [vmem:[#allocation4] sm:$0xff]
    %v39 = vld [vmem:[#allocation4 + $0x8] sm:$0xff]
    %v40 = vld [vmem:[#allocation4 + $0x10] sm:$0xff]
    %v41 = vld [vmem:[#allocation4 + $0x18] sm:$0xff]
    %v42 = vld [vmem:[#allocation4 + $0x20] sm:$0xff]
    %v43 = vld [vmem:[#allocation4 + $0x28] sm:$0xff]
    %v44 = vld [vmem:[#allocation4 + $0x30] sm:$0xff]
    %v45 = vld [vmem:[#allocation4 + $0x38] sm:$0xff]
    %v46 = vld [vmem:[#allocation4 + $0x40] sm:$0xff]
    %v47 = vld [vmem:[#allocation4 + $0x48] sm:$0xff]
    %v48 = vld [vmem:[#allocation4 + $0x50] sm:$0xff]
    %v49 = vld [vmem:[#allocation4 + $0x58] sm:$0xff]
    %v50 = vld [vmem:[#allocation4 + $0x60] sm:$0xff]
    %v51 = vld [vmem:[#allocation4 + $0x68] sm:$0xff]
    %v52 = vld [vmem:[#allocation4 + $0x70] sm:$0xff]
    %v53 = vld [vmem:[#allocation4 + $0x78] sm:$0xff]
    %v54 = vld [vmem:[#allocation4 + $0x80] sm:$0xff]
    %v55 = vld [vmem:[#allocation4 + $0x88] sm:$0xff]
    %v56 = vld [vmem:[#allocation4 + $0x90] sm:$0xff]
    %v57 = vld [vmem:[#allocation4 + $0x98] sm:$0xff]
    %v58 = vld [vmem:[#allocation4 + $0xa0] sm:$0xff]
    %v59 = vld [vmem:[#allocation4 + $0xa8] sm:$0xff]
    %v60 = vld [vmem:[#allocation4 + $0xb0] sm:$0xff]
    %v61 = vld [vmem:[#allocation4 + $0xb8] sm:$0xff]
    %v62 = vld [vmem:[#allocation4 + $0xc0] sm:$0xff]
    %v63 = vld [vmem:[#allocation4 + $0xc8] sm:$0xff]
    %v64 = vld [vmem:[#allocation4 + $0xd0] sm:$0xff]
    %v65 = vld [vmem:[#allocation4 + $0xd8] sm:$0xff]
    %v66 = vld [vmem:[#allocation4 + $0xe0] sm:$0xff]
    %v67 = vld [vmem:[#allocation4 + $0xe8] sm:$0xff]
    %v68 = vld [vmem:[#allocation4 + $0xf0] sm:$0xff]
    %v69 = vld [vmem:[#allocation4 + $0xf8] sm:$0xff]
    %v70 = vld [vmem:[#allocation4 + $0x100] sm:$0xff]
    %v71 = vld [vmem:[#allocation4 + $0x108] sm:$0xff]
    %v72 = vlaneseq
    %v73 = vshrl.u32 %v72, 7
    %v74 = vsub.s32 0, %v73
    %v75 = vrot.slane %v71, %v74
    %vm76 = vcmask 64512
    %v78 = vsel %vm76, %v37, 0
    %80 = vmatprep.subr.mxu0 0.0
    %81 = vmatpush1.msra.mxu0 0.0
    %82 = vmatprep.subr.mxu0 0.0
    %83 = vmatpush1.msra.mxu0 0.0
    %84 = vmatprep.subr.mxu0 0.0
    %85 = vmatpush1.msra.mxu0 0.0
    %86 = vmatprep.subr.mxu0 0.0
    %87 = vmatpush1.msra.mxu0 0.0
    %88 = vmatprep.subr.mxu0 0.0
    %89 = vmatpush1.msra.mxu0 0.0
    %90 = vmatprep.subr.mxu0 0.0
    %91 = vmatpush1.msra.mxu0 0.0
    %92 = vmatprep.subr.mxu0 0.0
    %93 = vmatpush1.msra.mxu0 0.0
    %94 = vmatprep.subr.mxu0 0.0
    %95 = vmatpush1.msra.mxu0 0.0
    %96 = vmatprep.subr.mxu0 0.0
    %97 = vmatpush1.msra.mxu0 0.0
    %98 = vmatprep.subr.mxu0 0.0
    %99 = vmatpush1.msra.mxu0 0.0
    %100 = vmatprep.subr.mxu0 0.0
    %101 = vmatpush1.msra.mxu0 0.0
    %102 = vmatprep.subr.mxu0 0.0
    %103 = vmatpush1.msra.mxu0 0.0
    %104 = vmatprep.subr.mxu0 0.0
    %105 = vmatpush1.msra.mxu0 0.0
    %106 = vmatprep.subr.mxu0 0.0
    %107 = vmatpush1.msra.mxu0 0.0
    %108 = vmatprep.subr.mxu0 0.0
    %109 = vmatpush1.msra.mxu0 0.0
    %110 = vmatprep.subr.mxu0 0.0
    %111 = vmatpush1.msra.mxu0 %v38
    %112 = vmatprep.subr.mxu0 0.0
    %113 = vmatpush2.msra.mxu0 0.0
    %114 = vmatprep.subr.mxu0 0.0
    %115 = vmatpush2.msra.mxu0 0.0
    %116 = vmatprep.subr.mxu0 0.0
    %117 = vmatpush2.msra.mxu0 0.0
    %118 = vmatprep.subr.mxu0 0.0
    %119 = vmatpush2.msra.mxu0 0.0
    %120 = vmatprep.subr.mxu0 0.0
    %121 = vmatpush2.msra.mxu0 0.0
    %122 = vmatprep.subr.mxu0 0.0
    %123 = vmatpush2.msra.mxu0 0.0
    %124 = vmatprep.subr.mxu0 0.0
    %125 = vmatpush2.msra.mxu0 0.0
    %126 = vmatprep.subr.mxu0 0.0
    %127 = vmatpush2.msra.mxu0 0.0
    %128 = vmatprep.subr.mxu0 0.0
    %129 = vmatpush2.msra.mxu0 0.0
    %130 = vmatprep.subr.mxu0 0.0
    %131 = vmatpush2.msra.mxu0 0.0
    %132 = vmatprep.subr.mxu0 0.0
    %133 = vmatpush2.msra.mxu0 0.0
    %134 = vmatprep.subr.mxu0 0.0
    %135 = vmatpush2.msra.mxu0 0.0
    %136 = vmatprep.subr.mxu0 0.0
    %137 = vmatpush2.msra.mxu0 0.0
    %138 = vmatprep.subr.mxu0 0.0
    %139 = vmatpush2.msra.mxu0 0.0
    %140 = vmatprep.subr.mxu0 0.0
    %141 = vmatpush2.msra.mxu0 0.0
    %142 = vmatprep.subr.mxu0 0.0
    %143 = vmatpush2.msra.mxu0 0.0
    %144 = vmatprep.mubr.f32.mxu0 0.0
    %145 = vmatmul.mubr.f32.gmra.mxu0 %v78
    %v146 = vpop.f32.mrf.mxu0
    %v147 = vadd.f32 %v75, %v146
    %v148 = vpop.f32.mrf.mxu0
    %149 = vdwg.mxu0
    %v150 = vmax.f32 %v147, 0.0
    %v151 = vlaneseq
    %v152 = vshrl.u32 %v151, 7
    %v153 = vsub.s32 1, %v152
    %v154 = vrot.slane %v71, %v153
    %155 = vmatprep.subr.mxu0 0.0
    %156 = vmatpush1.msra.mxu0 %v54
    %157 = vmatprep.subr.mxu0 0.0
    %158 = vmatpush1.msra.mxu0 %v53
    %159 = vmatprep.subr.mxu0 0.0
    %160 = vmatpush1.msra.mxu0 %v52
    %161 = vmatprep.subr.mxu0 0.0
    %162 = vmatpush1.msra.mxu0 %v51
    %163 = vmatprep.subr.mxu0 0.0
    %164 = vmatpush1.msra.mxu0 %v50
    %165 = vmatprep.subr.mxu0 0.0
    %166 = vmatpush1.msra.mxu0 %v49
    %167 = vmatprep.subr.mxu0 0.0
    %168 = vmatpush1.msra.mxu0 %v48
    %169 = vmatprep.subr.mxu0 0.0
    %170 = vmatpush1.msra.mxu0 %v47
    %171 = vmatprep.subr.mxu0 0.0
    %172 = vmatpush1.msra.mxu0 %v46
    %173 = vmatprep.subr.mxu0 0.0
    %174 = vmatpush1.msra.mxu0 %v45
    %175 = vmatprep.subr.mxu0 0.0
    %176 = vmatpush1.msra.mxu0 %v44
    %177 = vmatprep.subr.mxu0 0.0
    %178 = vmatpush1.msra.mxu0 %v43
    %179 = vmatprep.subr.mxu0 0.0
    %180 = vmatpush1.msra.mxu0 %v42
    %181 = vmatprep.subr.mxu0 0.0
    %182 = vmatpush1.msra.mxu0 %v41
    %183 = vmatprep.subr.mxu0 0.0
    %184 = vmatpush1.msra.mxu0 %v40
    %185 = vmatprep.subr.mxu0 0.0
    %186 = vmatpush1.msra.mxu0 %v39
    %187 = vmatprep.subr.mxu0 0.0
    %188 = vmatpush2.msra.mxu0 0.0
    %189 = vmatprep.subr.mxu0 0.0
    %190 = vmatpush2.msra.mxu0 0.0
    %191 = vmatprep.subr.mxu0 0.0
    %192 = vmatpush2.msra.mxu0 0.0
    %193 = vmatprep.subr.mxu0 0.0
    %194 = vmatpush2.msra.mxu0 0.0
    %195 = vmatprep.subr.mxu0 0.0
    %196 = vmatpush2.msra.mxu0 0.0
    %197 = vmatprep.subr.mxu0 0.0
    %198 = vmatpush2.msra.mxu0 0.0
    %199 = vmatprep.subr.mxu0 0.0
    %200 = vmatpush2.msra.mxu0 0.0
    %201 = vmatprep.subr.mxu0 0.0
    %202 = vmatpush2.msra.mxu0 0.0
    %203 = vmatprep.subr.mxu0 0.0
    %204 = vmatpush2.msra.mxu0 0.0
    %205 = vmatprep.subr.mxu0 0.0
    %206 = vmatpush2.msra.mxu0 0.0
    %207 = vmatprep.subr.mxu0 0.0
    %208 = vmatpush2.msra.mxu0 0.0
    %209 = vmatprep.subr.mxu0 0.0
    %210 = vmatpush2.msra.mxu0 0.0
    %211 = vmatprep.subr.mxu0 0.0
    %212 = vmatpush2.msra.mxu0 0.0
    %213 = vmatprep.subr.mxu0 0.0
    %214 = vmatpush2.msra.mxu0 0.0
    %215 = vmatprep.subr.mxu0 0.0
    %216 = vmatpush2.msra.mxu0 0.0
    %217 = vmatprep.subr.mxu0 0.0
    %218 = vmatpush2.msra.mxu0 0.0
    %219 = vmatprep.mubr.f32.mxu0 0.0
    %220 = vmatmul.mubr.f32.gmra.mxu0 %v150
    %v221 = vpop.f32.mrf.mxu0
    %v222 = vadd.f32 %v154, %v221
    %v223 = vpop.f32.mrf.mxu0
    %224 = vdwg.mxu0
    %v225 = vmax.f32 %v222, 0.0
    %v226 = vlaneseq
    %v227 = vshrl.u32 %v226, 7
    %v228 = vsub.s32 2, %v227
    %v229 = vrot.slane %v71, %v228
    %230 = vmatprep.subr.mxu0 0.0
    %231 = vmatpush1.msra.mxu0 %v70
    %232 = vmatprep.subr.mxu0 0.0
    %233 = vmatpush1.msra.mxu0 %v69
    %234 = vmatprep.subr.mxu0 0.0
    %235 = vmatpush1.msra.mxu0 %v68
    %236 = vmatprep.subr.mxu0 0.0
    %237 = vmatpush1.msra.mxu0 %v67
    %238 = vmatprep.subr.mxu0 0.0
    %239 = vmatpush1.msra.mxu0 %v66
    %240 = vmatprep.subr.mxu0 0.0
    %241 = vmatpush1.msra.mxu0 %v65
    %242 = vmatprep.subr.mxu0 0.0
    %243 = vmatpush1.msra.mxu0 %v64
    %244 = vmatprep.subr.mxu0 0.0
    %245 = vmatpush1.msra.mxu0 %v63
    %246 = vmatprep.subr.mxu0 0.0
    %247 = vmatpush1.msra.mxu0 %v62
    %248 = vmatprep.subr.mxu0 0.0
    %249 = vmatpush1.msra.mxu0 %v61
    %250 = vmatprep.subr.mxu0 0.0
    %251 = vmatpush1.msra.mxu0 %v60
    %252 = vmatprep.subr.mxu0 0.0
    %253 = vmatpush1.msra.mxu0 %v59
    %254 = vmatprep.subr.mxu0 0.0
    %255 = vmatpush1.msra.mxu0 %v58
    %256 = vmatprep.subr.mxu0 0.0
    %257 = vmatpush1.msra.mxu0 %v57
    %258 = vmatprep.subr.mxu0 0.0
    %259 = vmatpush1.msra.mxu0 %v56
    %260 = vmatprep.subr.mxu0 0.0
    %261 = vmatpush1.msra.mxu0 %v55
    %262 = vmatprep.subr.mxu0 0.0
    %263 = vmatpush2.msra.mxu0 0.0
    %264 = vmatprep.subr.mxu0 0.0
    %265 = vmatpush2.msra.mxu0 0.0
    %266 = vmatprep.subr.mxu0 0.0
    %267 = vmatpush2.msra.mxu0 0.0
    %268 = vmatprep.subr.mxu0 0.0
    %269 = vmatpush2.msra.mxu0 0.0
    %270 = vmatprep.subr.mxu0 0.0
    %271 = vmatpush2.msra.mxu0 0.0
    %272 = vmatprep.subr.mxu0 0.0
    %273 = vmatpush2.msra.mxu0 0.0
    %274 = vmatprep.subr.mxu0 0.0
    %275 = vmatpush2.msra.mxu0 0.0
    %276 = vmatprep.subr.mxu0 0.0
    %277 = vmatpush2.msra.mxu0 0.0
    %278 = vmatprep.subr.mxu0 0.0
    %279 = vmatpush2.msra.mxu0 0.0
    %280 = vmatprep.subr.mxu0 0.0
    %281 = vmatpush2.msra.mxu0 0.0
    %282 = vmatprep.subr.mxu0 0.0
    %283 = vmatpush2.msra.mxu0 0.0
    %284 = vmatprep.subr.mxu0 0.0
    %285 = vmatpush2.msra.mxu0 0.0
    %286 = vmatprep.subr.mxu0 0.0
    %287 = vmatpush2.msra.mxu0 0.0
    %288 = vmatprep.subr.mxu0 0.0
    %289 = vmatpush2.msra.mxu0 0.0
    %290 = vmatprep.subr.mxu0 0.0
    %291 = vmatpush2.msra.mxu0 0.0
    %292 = vmatprep.subr.mxu0 0.0
    %293 = vmatpush2.msra.mxu0 0.0
    %294 = vmatprep.mubr.f32.mxu0 0.0
    %295 = vmatmul.mubr.f32.gmra.mxu0 %v225
    %v296 = vpop.f32.mrf.mxu0
    %v297 = vadd.f32 %v229, %v296
    %v298 = vpop.f32.mrf.mxu0
    %299 = vdwg.mxu0
    %vm300 = vcmask 31744
    %301 = vst.msk [vmem:[%s2] sm:$0xff] %vm300, %v297
    // Predicated region
    $region18: #{tpu_custom_call.1} parent=1 // pred_check
      _
    $region19: #{tpu_custom_call.1} parent=1 // pred_check_branch
      %303 = sbr.rel (0) target = $region21
    $region20: #{tpu_custom_call.1} parent=1 // pred_region
      _
    $region21: #{tpu_custom_call.1} parent=1 // pred_fallthru
      _
    // Predicated region
    $region22: #{tpu_custom_call.1} parent=1 // pred_check
      _
    $region23: #{tpu_custom_call.1} parent=1 // pred_check_branch
      %305 = sbr.rel (0) target = $region25
    $region24: #{tpu_custom_call.1} parent=1 // pred_region
      _
    $region25: #{tpu_custom_call.1} parent=1 // pred_fallthru
      _
    %306 = vsyncpa [#allocation3], 1
    %307 = vsyncpa [#allocation5], 1

</llo_original>
